<compile_context>
chip_gen: v6e
topology: v6e:2x2x1
jax: 0.10.0
libtpu: 0.0.40
codegen_flags: <defaults>
</compile_context>

<pallas_src>
import jax
import jax.numpy as jnp
from jax.experimental import pallas as pl
from jax.experimental.pallas import tpu as pltpu


_TILE_M_MAX = 8192   # rows per grid step (multiple of 128, >= review's 2048)
_LANE = 128


def _round_up(x, m):
    return (x + m - 1) // m * m


def _mlp1_kernel(x_ref, w1_ref, b1_ref, w2t_ref, b2_ref, o_ref):
    """One-hidden-layer MLP, lane-dense output row.

    x_ref  : (TILE_M, D)   bfloat16
    w1_ref : (D, H)        bfloat16
    b1_ref : (1, H)        float32
    w2t_ref: (1, H)        float32   (second-layer weight, transposed)
    b2_ref : (1, 1)        float32
    o_ref  : (1, 1, TILE_M) float32  (lane-dense row per grid step)
    """
    x = x_ref[...]
    # MXU matmul with f32 accumulation.
    h = jnp.dot(x, w1_ref[...], preferred_element_type=jnp.float32)
    h = jnp.tanh(h + b1_ref[...])                       # (TILE_M, H) f32
    # Output width is 1, so compute it directly in lane-dense (1, TILE_M) form:
    # (1, H) @ (H, TILE_M).  Avoids the degenerate (H, 1) matmul / (M, 1)
    # masked-store layout entirely.
    out = jnp.dot(w2t_ref[...], h.T,
                  preferred_element_type=jnp.float32) + b2_ref[...]
    o_ref[0] = out.astype(o_ref.dtype)                  # (1, TILE_M)


def multi_nn_1layer_net_pallas(nearest_neibours, params):
    """Pallas-backed equivalent of classes1.multi_nn_1layer_net forward."""
    w1, b1, w2, b2 = params
    B, Nn, D = nearest_neibours.shape
    H = w1.shape[1]
    M = B * Nn

    # Row tile: as large as practical for pipelining, multiple of 128 so the
    # output row is lane-dense; pad M up to a whole number of tiles.
    tile_m = min(_TILE_M_MAX, _round_up(M, _LANE))
    m_pad = _round_up(M, tile_m)
    num_tiles = m_pad // tile_m

    x2d = nearest_neibours.reshape(M, D)
    if m_pad != M:
        x2d = jnp.pad(x2d, ((0, m_pad - M), (0, 0)))

    # HBM-bound: halve activation/W1 bytes with bf16; keep f32 accumulation.
    x2d = x2d.astype(jnp.bfloat16)
    w1_bf = w1.astype(jnp.bfloat16)
    b1_f = b1.reshape(1, H).astype(jnp.float32)
    w2t = w2.reshape(1, H).astype(jnp.float32)
    b2_f = b2.reshape(1, 1).astype(jnp.float32)

    out = pl.pallas_call(
        _mlp1_kernel,
        out_shape=jax.ShapeDtypeStruct((num_tiles, 1, tile_m), jnp.float32),
        grid=(num_tiles,),
        in_specs=[
            pl.BlockSpec((tile_m, D), lambda i: (i, 0)),   # x row tile
            pl.BlockSpec((D, H), lambda i: (0, 0)),        # W1 (resident)
            pl.BlockSpec((1, H), lambda i: (0, 0)),        # b1
            pl.BlockSpec((1, H), lambda i: (0, 0)),        # W2^T row
            pl.BlockSpec((1, 1), lambda i: (0, 0)),        # b2
        ],
        out_specs=pl.BlockSpec((1, 1, tile_m), lambda i: (i, 0, 0)),
        compiler_params=pltpu.CompilerParams(
            dimension_semantics=("parallel",),
            vmem_limit_bytes=32 * 1024 * 1024,
        ),
    )(x2d, w1_bf, b1_f, w2t, b2_f)

    return out.reshape(m_pad)[:M].reshape(B, Nn, 1)


def multi_nn_0layer_net_forward(inputs, params):
    """Mirrors _multi_nn_0layer_net.forward: takes (nearest_neibours, Na_data),
    ignores Na_data, applies the inner 1-layer net."""
    nearest_neibours, _na_data = inputs
    return multi_nn_1layer_net_pallas(nearest_neibours, params)


def init_params(key, d_feat, hidden):
    k1, k2, k3, k4 = jax.random.split(key, 4)
    w1 = jax.random.normal(k1, (d_feat, hidden), jnp.float32) * 0.1
    b1 = jax.random.normal(k2, (1, hidden), jnp.float32) * 0.01
    w2 = jax.random.normal(k3, (hidden, 1), jnp.float32) * 0.1
    b2 = jax.random.normal(k4, (1, 1), jnp.float32) * 0.01
    return (w1, b1, w2, b2)


if __name__ == "__main__":
    key = jax.random.PRNGKey(0)
    k_in, k_na, k_par = jax.random.split(key, 3)

    B, N_NEIGH, D_FEAT, HIDDEN = 2, 8, 32, 32

    nearest_neibours = jax.random.normal(k_in, (B, N_NEIGH, D_FEAT), jnp.float32)
    Na_data = jax.random.normal(k_na, (B,), jnp.float32)  # unused by forward
    params = init_params(k_par, D_FEAT, HIDDEN)

    result = multi_nn_0layer_net_forward((nearest_neibours, Na_data), params)
    result = jax.block_until_ready(result)

    # Reference with the same bf16 rounding of x / W1 that the kernel applies.
    w1, b1, w2, b2 = params
    xb = nearest_neibours.reshape(-1, D_FEAT).astype(jnp.bfloat16).astype(jnp.float32)
    w1b = w1.astype(jnp.bfloat16).astype(jnp.float32)
    ref = (jnp.tanh(xb @ w1b + b1) @ w2 + b2).reshape(B, N_NEIGH, 1)

    assert result.shape == (B, N_NEIGH, 1)
    err = float(jnp.max(jnp.abs(result - ref)))
    assert jnp.allclose(result, ref, atol=1e-3, rtol=1e-3), f"max abs err {err}"

    print("KERNEL_OK")
</pallas_src>

<mosaic_0001>
module attributes {stable_mosaic.version = 11 : i64} {
  func.func @_mlp1_kernel(%arg0: i32, %arg1: memref<128x32xbf16, #tpu.memory_space<vmem>>, %arg2: memref<32x32xbf16, #tpu.memory_space<vmem>>, %arg3: memref<1x32xf32, #tpu.memory_space<vmem>>, %arg4: memref<1x32xf32, #tpu.memory_space<vmem>>, %arg5: memref<1x1xf32, #tpu.memory_space<vmem>>, %arg6: memref<1x1x128xf32, #tpu.memory_space<vmem>>) attributes {dimension_semantics = [#tpu.dimension_semantics<parallel>], iteration_bounds = array<i64: 1>, scalar_prefetch = 0 : i64, scratch_operands = 0 : i64, tpu.core_type = #tpu.core_type<tc>, window_params = [{transform_indices = @transform_0, window_bounds = array<i64: 128, 32>}, {pipeline_mode = #tpu.pipeline_mode<synchronous>, transform_indices = @transform_1, window_bounds = array<i64: 32, 32>}, {pipeline_mode = #tpu.pipeline_mode<synchronous>, transform_indices = @transform_2, window_bounds = array<i64: 1, 32>}, {pipeline_mode = #tpu.pipeline_mode<synchronous>, transform_indices = @transform_3, window_bounds = array<i64: 1, 32>}, {pipeline_mode = #tpu.pipeline_mode<synchronous>, transform_indices = @transform_4, window_bounds = array<i64: 1, 1>}, {transform_indices = @transform_5, window_bounds = array<i64: 1, 1, 128>}]} {
    %c0 = arith.constant 0 : index
    %c0_0 = arith.constant 0 : index
    %0 = vector.load %arg1[%c0, %c0_0] : memref<128x32xbf16, #tpu.memory_space<vmem>>, vector<128x32xbf16>
    %c0_1 = arith.constant 0 : index
    %c0_2 = arith.constant 0 : index
    %1 = vector.load %arg2[%c0_1, %c0_2] : memref<32x32xbf16, #tpu.memory_space<vmem>>, vector<32x32xbf16>
    %cst = arith.constant dense<0.000000e+00> : vector<128x32xf32>
    %2 = tpu.matmul %0, %1, %cst {dimension_numbers = #tpu.dot_dimension_numbers<[1], [0], [0], [1], [0, 0, 1, 1], [], []>} : vector<128x32xbf16>, vector<32x32xbf16>, vector<128x32xf32> -> vector<128x32xf32>
    %c0_3 = arith.constant 0 : index
    %c0_4 = arith.constant 0 : index
    %3 = vector.load %arg3[%c0_3, %c0_4] : memref<1x32xf32, #tpu.memory_space<vmem>>, vector<1x32xf32>
    %4 = vector.broadcast %3 : vector<1x32xf32> to vector<128x32xf32>
    %5 = arith.addf %2, %4 : vector<128x32xf32>
    %6 = math.tanh %5 : vector<128x32xf32>
    %c0_5 = arith.constant 0 : index
    %c0_6 = arith.constant 0 : index
    %7 = vector.load %arg4[%c0_5, %c0_6] : memref<1x32xf32, #tpu.memory_space<vmem>>, vector<1x32xf32>
    %8 = tpu.transpose %6, [1, 0] : vector<128x32xf32> -> vector<32x128xf32>
    %cst_7 = arith.constant dense<0.000000e+00> : vector<1x128xf32>
    %9 = tpu.matmul %7, %8, %cst_7 {dimension_numbers = #tpu.dot_dimension_numbers<[1], [0], [0], [1], [0, 0, 1, 1], [], []>} : vector<1x32xf32>, vector<32x128xf32>, vector<1x128xf32> -> vector<1x128xf32>
    %c0_8 = arith.constant 0 : index
    %c0_9 = arith.constant 0 : index
    %10 = vector.load %arg5[%c0_8, %c0_9] : memref<1x1xf32, #tpu.memory_space<vmem>>, vector<1x1xf32>
    %11 = vector.broadcast %10 : vector<1x1xf32> to vector<1x128xf32>
    %12 = arith.addf %9, %11 : vector<1x128xf32>
    %c0_10 = arith.constant 0 : index
    %c0_11 = arith.constant 0 : index
    %c0_12 = arith.constant 0 : index
    %13 = vector.load %arg6[%c0_10, %c0_11, %c0_12] : memref<1x1x128xf32, #tpu.memory_space<vmem>>, vector<1x1x128xf32>
    %14 = vector.shape_cast %13 : vector<1x1x128xf32> to vector<1x128xf32>
    %15 = vector.shape_cast %12 : vector<1x128xf32> to vector<1x1x128xf32>
    tpu.vector_store %arg6[%c0_10, %c0_11, %c0_12], %15 {strides = array<i32>} : memref<1x1x128xf32, #tpu.memory_space<vmem>>, vector<1x1x128xf32>,
    return
  }
  func.func @transform_0(%arg0: i32) -> (i32, i32) {
    %c0_i32 = arith.constant 0 : i32
    %c0_i32_0 = arith.constant 0 : i32
    return %arg0, %c0_i32 : i32, i32
  }
  func.func @transform_1(%arg0: i32) -> (i32, i32) {
    %c0_i32 = arith.constant 0 : i32
    %c0_i32_0 = arith.constant 0 : i32
    %c0_i32_1 = arith.constant 0 : i32
    return %c0_i32, %c0_i32_0 : i32, i32
  }
  func.func @transform_2(%arg0: i32) -> (i32, i32) {
    %c0_i32 = arith.constant 0 : i32
    %c0_i32_0 = arith.constant 0 : i32
    %c0_i32_1 = arith.constant 0 : i32
    return %c0_i32, %c0_i32_0 : i32, i32
  }
  func.func @transform_3(%arg0: i32) -> (i32, i32) {
    %c0_i32 = arith.constant 0 : i32
    %c0_i32_0 = arith.constant 0 : i32
    %c0_i32_1 = arith.constant 0 : i32
    return %c0_i32, %c0_i32_0 : i32, i32
  }
  func.func @transform_4(%arg0: i32) -> (i32, i32) {
    %c0_i32 = arith.constant 0 : i32
    %c0_i32_0 = arith.constant 0 : i32
    %c0_i32_1 = arith.constant 0 : i32
    return %c0_i32, %c0_i32_0 : i32, i32
  }
  func.func @transform_5(%arg0: i32) -> (i32, i32, i32) {
    %c0_i32 = arith.constant 0 : i32
    %c0_i32_0 = arith.constant 0 : i32
    %c0_i32_1 = arith.constant 0 : i32
    return %arg0, %c0_i32, %c0_i32_0 : i32, i32, i32
  }
}

</mosaic_0001>

<llo_original>
// kernel: tpu_custom_call.1
$region0: #{tpu_custom_call.1}
  #allocation0 [shape = 'u32[]', space=smem, size = 0x4, offset = 0x4, fixed_abs, tag = 'smem constant byte address 0x4 - core index']
  #allocation1 [shape = 'u32[144,128]{1,0:T(1,128)}', space=vmem, size = 0x12000, scoped, tag = 'internal scratch']
  #allocation2 [shape = 'f32[1,1]{1,0:T(1,128)S(1)}', space=vmem, size = 0x200, scoped, tag = 'scoped memory for tpu_custom_call.1']
  %s0 = inlined_call_operand.vmem [shape: bf16[128,32], index: 0, kind: input, shape index: {}]
  %s1 = inlined_call_operand.vmem [shape: bf16[32,32], index: 1, kind: input, shape index: {}]
  %s2 = inlined_call_operand.vmem [shape: f32[1,32], index: 2, kind: input, shape index: {}]
  %s3 = inlined_call_operand.vmem [shape: f32[1,32], index: 3, kind: input, shape index: {}]
  %s4 = inlined_call_operand.<no memory space> [shape: f32[1,1], index: 4, kind: input, shape index: {}]
  %s5 = inlined_call_operand.hbm [shape: f32[1,1,128], index: 5, kind: output, shape index: {}]
  %s6 = sld [smem:[#allocation0]]
  $region30: #{tpu_custom_call.1} parent=0
    _
  %s8 = ssub.s32 1, %s6
  %s9 = scalar_select 0, %s8, %s6
  %v10 = vstv %s4
  %11 = vst [vmem:[#allocation2] sm:$0x1] %v10
  $region1: #{tpu_custom_call.1} parent=0
    #allocation3 [shape = 'u8[512]{0}', space=vmem, size = 0x400, scoped, tag = 'output window, operand 0, single buffered']
    #allocation4 [shape = 's32[1]{0}', space=sflag, size = 0x4, scoped, tag = 'scoped memory for tpu_custom_call.1']
    %12 = vsyncpa [#allocation4], 0
    // Predicated region
    $region2: #{tpu_custom_call.1} parent=1 // pred_check
      _
    $region3: #{tpu_custom_call.1} parent=1 // pred_check_branch
      %14 = sbr.rel (0) target = $region5
    $region4: #{tpu_custom_call.1} parent=1 // pred_region
      _
    $region5: #{tpu_custom_call.1} parent=1 // pred_fallthru
      _
    // Predicated region
    $region6: #{tpu_custom_call.1} parent=1 // pred_check
      _
    $region7: #{tpu_custom_call.1} parent=1 // pred_check_branch
      %16 = sbr.rel (0) target = $region9
    $region8: #{tpu_custom_call.1} parent=1 // pred_region
      _
    $region9: #{tpu_custom_call.1} parent=1 // pred_fallthru
      _
    // Predicated region
    $region10: #{tpu_custom_call.1} parent=1 // pred_check
      _
    $region11: #{tpu_custom_call.1} parent=1 // pred_check_branch
      %18 = sbr.rel (0) target = $region13
    $region12: #{tpu_custom_call.1} parent=1 // pred_region
      _
    $region13: #{tpu_custom_call.1} parent=1 // pred_fallthru
      _
    // Predicated region
    $region14: #{tpu_custom_call.1} parent=1 // pred_check
      _
    $region15: #{tpu_custom_call.1} parent=1 // pred_check_branch
      %20 = sbr.rel (0) target = $region17
    $region16: #{tpu_custom_call.1} parent=1 // pred_region
      _
    $region17: #{tpu_custom_call.1} parent=1 // pred_fallthru
      _
    // Predicated region
    $region18: #{tpu_custom_call.1} parent=1 // pred_check
      _
    $region19: #{tpu_custom_call.1} parent=1 // pred_check_branch
      %22 = sbr.rel (0) target = $region21
    $region20: #{tpu_custom_call.1} parent=1 // pred_region
      _
    $region21: #{tpu_custom_call.1} parent=1 // pred_fallthru
      _
    %v24 = vld [vmem:[%s0] sm:$0xf]
    %v25 = vld [vmem:[%s0 + $0x4] sm:$0xf]
    %v26 = vld [vmem:[%s0 + $0x8] sm:$0xf]
    %v27 = vld [vmem:[%s0 + $0xc] sm:$0xf]
    %v28 = vld [vmem:[%s0 + $0x10] sm:$0xf]
    %v29 = vld [vmem:[%s0 + $0x14] sm:$0xf]
    %v30 = vld [vmem:[%s0 + $0x18] sm:$0xf]
    %v31 = vld [vmem:[%s0 + $0x1c] sm:$0xf]
    %v32 = vld [vmem:[%s0 + $0x20] sm:$0xf]
    %v33 = vld [vmem:[%s0 + $0x24] sm:$0xf]
    %v34 = vld [vmem:[%s0 + $0x28] sm:$0xf]
    %v35 = vld [vmem:[%s0 + $0x2c] sm:$0xf]
    %v36 = vld [vmem:[%s0 + $0x30] sm:$0xf]
    %v37 = vld [vmem:[%s0 + $0x34] sm:$0xf]
    %v38 = vld [vmem:[%s0 + $0x38] sm:$0xf]
    %v39 = vld [vmem:[%s0 + $0x3c] sm:$0xf]
    %v40 = vld [vmem:[%s1] sm:$0xf]
    %v41 = vld [vmem:[%s1 + $0x4] sm:$0xf]
    %v42 = vld [vmem:[%s1 + $0x8] sm:$0xf]
    %v43 = vld [vmem:[%s1 + $0xc] sm:$0xf]
    %v44 = vld [vmem:[%s2] sm:$0x1]
    %v46 = vlaneseq
    %v47 = vshrl.u32 %v46, 7
    %v48 = vsub.s32 0, %v47
    %v49 = vrot.slane %v44, %v48
    %v67 = vunpack.c.l.b16 %v24
    %v68 = vunpack.c.l.b16 %v25
    %v69 = vunpack.c.l.b16 %v26
    %v70 = vunpack.c.l.b16 %v27
    %v71 = vunpack.c.l.b16 %v28
    %v72 = vunpack.c.l.b16 %v29
    %v73 = vunpack.c.l.b16 %v30
    %v74 = vunpack.c.l.b16 %v31
    %v75 = vunpack.c.l.b16 %v32
    %v76 = vunpack.c.l.b16 %v33
    %v77 = vunpack.c.l.b16 %v34
    %v78 = vunpack.c.l.b16 %v35
    %v79 = vunpack.c.l.b16 %v36
    %v80 = vunpack.c.l.b16 %v37
    %v81 = vunpack.c.l.b16 %v38
    %v82 = vunpack.c.l.b16 %v39
    %v83 = vpack.c.b16 %v68, %v67
    %v84 = vpack.c.b16 %v70, %v69
    %v85 = vpack.c.b16 %v72, %v71
    %v86 = vpack.c.b16 %v74, %v73
    %v87 = vpack.c.b16 %v76, %v75
    %v88 = vpack.c.b16 %v78, %v77
    %v89 = vpack.c.b16 %v80, %v79
    %v90 = vpack.c.b16 %v82, %v81
    %v95 = vunpack.c.l.b16 %v40
    %v96 = vunpack.c.l.b16 %v41
    %v97 = vunpack.c.l.b16 %v42
    %v98 = vunpack.c.l.b16 %v43
    %v99 = vpack.c.b16 %v96, %v95
    %v100 = vpack.c.b16 %v98, %v97
    %vm103 = vcmask 261120
    %v105 = vsel %vm103, %v83, 0
    %v108 = vsel %vm103, %v84, 0
    %v111 = vsel %vm103, %v85, 0
    %v114 = vsel %vm103, %v86, 0
    %v117 = vsel %vm103, %v87, 0
    %v120 = vsel %vm103, %v88, 0
    %v123 = vsel %vm103, %v89, 0
    %v126 = vsel %vm103, %v90, 0
    %128 = vmatprep.subr.bf16.mxu0 0
    %129 = vmatpush1.bf16.msra.mxu0 0
    %130 = vmatprep.subr.bf16.mxu0 0
    %131 = vmatpush1.bf16.msra.mxu0 0
    %132 = vmatprep.subr.bf16.mxu0 0
    %133 = vmatpush1.bf16.msra.mxu0 0
    %134 = vmatprep.subr.bf16.mxu0 0
    %135 = vmatpush1.bf16.msra.mxu0 0
    %136 = vmatprep.subr.bf16.mxu0 0
    %137 = vmatpush1.bf16.msra.mxu0 0
    %138 = vmatprep.subr.bf16.mxu0 0
    %139 = vmatpush1.bf16.msra.mxu0 0
    %140 = vmatprep.subr.bf16.mxu0 0
    %141 = vmatpush1.bf16.msra.mxu0 %v100
    %142 = vmatprep.subr.bf16.mxu0 0
    %143 = vmatpush1.bf16.msra.mxu0 %v99
    %144 = vmatprep.subr.bf16.mxu0 0
    %145 = vmatpush2.bf16.msra.mxu0 0
    %146 = vmatprep.subr.bf16.mxu0 0
    %147 = vmatpush2.bf16.msra.mxu0 0
    %148 = vmatprep.subr.bf16.mxu0 0
    %149 = vmatpush2.bf16.msra.mxu0 0
    %150 = vmatprep.subr.bf16.mxu0 0
    %151 = vmatpush2.bf16.msra.mxu0 0
    %152 = vmatprep.subr.bf16.mxu0 0
    %153 = vmatpush2.bf16.msra.mxu0 0
    %154 = vmatprep.subr.bf16.mxu0 0
    %155 = vmatpush2.bf16.msra.mxu0 0
    %156 = vmatprep.subr.bf16.mxu0 0
    %157 = vmatpush2.bf16.msra.mxu0 0
    %158 = vmatprep.subr.bf16.mxu0 0
    %159 = vmatpush2.bf16.msra.mxu0 0
    %160 = vmatprep.mubr.bf16.mxu0 0
    %161 = vmatmul.mubr.bf16.gmra.mxu0 %v105
    %v162 = vpop.f32.mrf.mxu0
    %v163 = vadd.f32 %v49, %v162
    %v164 = vpop.f32.mrf.mxu0
    %v165 = vpop.f32.mrf.mxu0
    %v166 = vadd.f32 %v49, %v165
    %v167 = vpop.f32.mrf.mxu0
    %168 = vmatprep.mubr.bf16.mxu0 0
    %169 = vmatmul.mubr.bf16.gmra.mxu0 %v108
    %v170 = vpop.f32.mrf.mxu0
    %v171 = vadd.f32 %v49, %v170
    %v172 = vpop.f32.mrf.mxu0
    %v173 = vpop.f32.mrf.mxu0
    %v174 = vadd.f32 %v49, %v173
    %v175 = vpop.f32.mrf.mxu0
    %176 = vmatprep.mubr.bf16.mxu0 0
    %177 = vmatmul.mubr.bf16.gmra.mxu0 %v111
    %v178 = vpop.f32.mrf.mxu0
    %v179 = vadd.f32 %v49, %v178
    %v180 = vpop.f32.mrf.mxu0
    %v181 = vpop.f32.mrf.mxu0
    %v182 = vadd.f32 %v49, %v181
    %v183 = vpop.f32.mrf.mxu0
    %184 = vmatprep.mubr.bf16.mxu0 0
    %185 = vmatmul.mubr.bf16.gmra.mxu0 %v114
    %v186 = vpop.f32.mrf.mxu0
    %v187 = vadd.f32 %v49, %v186
    %v188 = vpop.f32.mrf.mxu0
    %v189 = vpop.f32.mrf.mxu0
    %v190 = vadd.f32 %v49, %v189
    %v191 = vpop.f32.mrf.mxu0
    %192 = vmatprep.mubr.bf16.mxu0 0
    %193 = vmatmul.mubr.bf16.gmra.mxu0 %v117
    %v194 = vpop.f32.mrf.mxu0
    %v195 = vadd.f32 %v49, %v194
    %v196 = vpop.f32.mrf.mxu0
    %v197 = vpop.f32.mrf.mxu0
    %v198 = vadd.f32 %v49, %v197
    %v199 = vpop.f32.mrf.mxu0
    %200 = vmatprep.mubr.bf16.mxu0 0
    %201 = vmatmul.mubr.bf16.gmra.mxu0 %v120
    %v202 = vpop.f32.mrf.mxu0
    %v203 = vadd.f32 %v49, %v202
    %v204 = vpop.f32.mrf.mxu0
    %v205 = vpop.f32.mrf.mxu0
    %v206 = vadd.f32 %v49, %v205
    %v207 = vpop.f32.mrf.mxu0
    %208 = vmatprep.mubr.bf16.mxu0 0
    %209 = vmatmul.mubr.bf16.gmra.mxu0 %v123
    %v210 = vpop.f32.mrf.mxu0
    %v211 = vadd.f32 %v49, %v210
    %v212 = vpop.f32.mrf.mxu0
    %v213 = vpop.f32.mrf.mxu0
    %v214 = vadd.f32 %v49, %v213
    %v215 = vpop.f32.mrf.mxu0
    %216 = vmatprep.mubr.bf16.mxu0 0
    %217 = vmatmul.mubr.bf16.gmra.mxu0 %v126
    %v218 = vpop.f32.mrf.mxu0
    %v219 = vadd.f32 %v49, %v218
    %v220 = vpop.f32.mrf.mxu0
    %v221 = vpop.f32.mrf.mxu0
    %v222 = vadd.f32 %v49, %v221
    %v223 = vpop.f32.mrf.mxu0
    %224 = vdwg.mxu0
    %v225 = vtanh.pop %v163
    %v226 = vtanh.pop %v166
    %v227 = vtanh.pop %v171
    %v228 = vtanh.pop %v174
    %v229 = vtanh.pop %v179
    %v230 = vtanh.pop %v182
    %v231 = vtanh.pop %v187
    %v232 = vtanh.pop %v190
    %v233 = vtanh.pop %v195
    %v234 = vtanh.pop %v198
    %v235 = vtanh.pop %v203
    %v236 = vtanh.pop %v206
    %v237 = vtanh.pop %v211
    %v238 = vtanh.pop %v214
    %v239 = vtanh.pop %v219
    %v240 = vtanh.pop %v222
    %v241 = vld [vmem:[%s3] sm:$0x1]
    %v242 = vld [vmem:[#allocation2] sm:$0x1]
    %244 = vset.pattern.permute.xlu0 0
    %245 = vperm.xlu0 %244, %v242
    %v246 = vpop.permute.xlu0 %245
    %v248 = vlaneseq
    %v249 = vshrl.u32 %v248, 7
    %v250 = vsub.s32 0, %v249
    %v251 = vrot.slane %v246, %v250
    %v253 = vsel %vm103, %v241, 0
    %v256 = vsel %vm103, %v225, 0
    %v259 = vsel %vm103, %v226, 0
    %v262 = vsel %vm103, %v227, 0
    %v265 = vsel %vm103, %v228, 0
    %v268 = vsel %vm103, %v229, 0
    %v271 = vsel %vm103, %v230, 0
    %v274 = vsel %vm103, %v231, 0
    %v277 = vsel %vm103, %v232, 0
    %v280 = vsel %vm103, %v233, 0
    %v283 = vsel %vm103, %v234, 0
    %v286 = vsel %vm103, %v235, 0
    %v289 = vsel %vm103, %v236, 0
    %v292 = vsel %vm103, %v237, 0
    %v295 = vsel %vm103, %v238, 0
    %v298 = vsel %vm103, %v239, 0
    %v301 = vsel %vm103, %v240, 0
    %303 = vmatprep.subr.mxu0 0.0
    %304 = vmatpush1.xpose.msra.mxu0 %v301
    %305 = vmatprep.subr.mxu0 0.0
    %306 = vmatpush1.xpose.msra.mxu0 %v298
    %307 = vmatprep.subr.mxu0 0.0
    %308 = vmatpush1.xpose.msra.mxu0 %v295
    %309 = vmatprep.subr.mxu0 0.0
    %310 = vmatpush1.xpose.msra.mxu0 %v292
    %311 = vmatprep.subr.mxu0 0.0
    %312 = vmatpush1.xpose.msra.mxu0 %v289
    %313 = vmatprep.subr.mxu0 0.0
    %314 = vmatpush1.xpose.msra.mxu0 %v286
    %315 = vmatprep.subr.mxu0 0.0
    %316 = vmatpush1.xpose.msra.mxu0 %v283
    %317 = vmatprep.subr.mxu0 0.0
    %318 = vmatpush1.xpose.msra.mxu0 %v280
    %319 = vmatprep.subr.mxu0 0.0
    %320 = vmatpush1.xpose.msra.mxu0 %v277
    %321 = vmatprep.subr.mxu0 0.0
    %322 = vmatpush1.xpose.msra.mxu0 %v274
    %323 = vmatprep.subr.mxu0 0.0
    %324 = vmatpush1.xpose.msra.mxu0 %v271
    %325 = vmatprep.subr.mxu0 0.0
    %326 = vmatpush1.xpose.msra.mxu0 %v268
    %327 = vmatprep.subr.mxu0 0.0
    %328 = vmatpush1.xpose.msra.mxu0 %v265
    %329 = vmatprep.subr.mxu0 0.0
    %330 = vmatpush1.xpose.msra.mxu0 %v262
    %331 = vmatprep.subr.mxu0 0.0
    %332 = vmatpush1.xpose.msra.mxu0 %v259
    %333 = vmatprep.subr.mxu0 0.0
    %334 = vmatpush1.xpose.msra.mxu0 %v256
    %335 = vmatprep.subr.mxu0 0.0
    %336 = vmatpush2.xpose.msra.mxu0 0.0
    %337 = vmatprep.subr.mxu0 0.0
    %338 = vmatpush2.xpose.msra.mxu0 0.0
    %339 = vmatprep.subr.mxu0 0.0
    %340 = vmatpush2.xpose.msra.mxu0 0.0
    %341 = vmatprep.subr.mxu0 0.0
    %342 = vmatpush2.xpose.msra.mxu0 0.0
    %343 = vmatprep.subr.mxu0 0.0
    %344 = vmatpush2.xpose.msra.mxu0 0.0
    %345 = vmatprep.subr.mxu0 0.0
    %346 = vmatpush2.xpose.msra.mxu0 0.0
    %347 = vmatprep.subr.mxu0 0.0
    %348 = vmatpush2.xpose.msra.mxu0 0.0
    %349 = vmatprep.subr.mxu0 0.0
    %350 = vmatpush2.xpose.msra.mxu0 0.0
    %351 = vmatprep.subr.mxu0 0.0
    %352 = vmatpush2.xpose.msra.mxu0 0.0
    %353 = vmatprep.subr.mxu0 0.0
    %354 = vmatpush2.xpose.msra.mxu0 0.0
    %355 = vmatprep.subr.mxu0 0.0
    %356 = vmatpush2.xpose.msra.mxu0 0.0
    %357 = vmatprep.subr.mxu0 0.0
    %358 = vmatpush2.xpose.msra.mxu0 0.0
    %359 = vmatprep.subr.mxu0 0.0
    %360 = vmatpush2.xpose.msra.mxu0 0.0
    %361 = vmatprep.subr.mxu0 0.0
    %362 = vmatpush2.xpose.msra.mxu0 0.0
    %363 = vmatprep.subr.mxu0 0.0
    %364 = vmatpush2.xpose.msra.mxu0 0.0
    %365 = vmatprep.subr.mxu0 0.0
    %366 = vmatpush2.xpose.msra.mxu0 0.0
    %367 = vmatprep.mubr.f32.mxu0 0.0
    %368 = vmatmul.mubr.f32.gmra.mxu0 %v253
    %v369 = vpop.f32.mrf.mxu0
    %v370 = vadd.f32 %v251, %v369
    %v371 = vpop.f32.mrf.mxu0
    %372 = vdwg.mxu0
    %373 = vst [vmem:[#allocation3] sm:$0x1] %v370
    // Predicated region
    $region22: #{tpu_custom_call.1} parent=1 // pred_check
      _
    $region23: #{tpu_custom_call.1} parent=1 // pred_check_branch
      %375 = sbr.rel (0) target = $region25
    $region24: #{tpu_custom_call.1} parent=1 // pred_region
      %s377 = ssub.s32 16, 16
      %378 = vsyncadd [#allocation4], %s377
      %s380 = sshll.u32 [#allocation3], 4
      %s381 = int_to_ptr.vmem [resolvable:$true] %s380
      %383 = dma.vmem_to_hbm [thread:$0]  %s381, 16, %s5, [#allocation4]
    $region25: #{tpu_custom_call.1} parent=1 // pred_fallthru
      _
    // Predicated region
    $region26: #{tpu_custom_call.1} parent=1 // pred_check
      _
    $region27: #{tpu_custom_call.1} parent=1 // pred_check_branch
      %385 = sbr.rel (0) target = $region29
    $region28: #{tpu_custom_call.1} parent=1 // pred_region
      %386 = dma.done [#allocation4], 16
    $region29: #{tpu_custom_call.1} parent=1 // pred_fallthru
      _
    %387 = vsyncpa [#allocation4], 1

</llo_original>
